<compile_context>
chip_gen: v7x
topology: tpu7x:2x2x1
jax: 0.10.0
libtpu: 0.0.40
codegen_flags: <defaults>
</compile_context>

<pallas_src>
import jax
import jax.numpy as jnp
from jax.experimental import pallas as pl
from jax.experimental.pallas import tpu as pltpu

BN_EPS = 1e-5
_VMEM_LIMIT = 32 * 1024 * 1024      # safe on v5e/v6e (128 MiB phys) and v7x (64 MiB phys)
_TILE_BUDGET = 6 * 1024 * 1024      # VMEM budget for the double-buffered x/out tiles
_MAX_HW_TILE = 8192                 # hard cap on lane-tile width


def _pick_hw_tile(hw, cin, cout, dtype_bytes):
    """Largest multiple-of-128 divisor of hw whose pipelined tiles fit the VMEM budget."""
    if hw % 128 != 0:
        return hw                   # full extent (allowed: equals the array dim)
    # Per hw-column bytes across double-buffered input (Cin) and output (Cout) blocks.
    per_col = dtype_bytes * 2 * (cin + cout)
    cap = max(128, (_TILE_BUDGET // per_col) // 128 * 128)
    cap = min(cap, hw, _MAX_HW_TILE)
    best = 128
    for t in range(128, cap + 1, 128):
        if hw % t == 0:
            best = t
    return best


def _stats_kernel(x_ref, w_ref, stats_ref):
    # x_ref: (1, Cin, hw_tile)   w_ref: (Cout, Cin)
    # stats_ref: (2, Cout, 1) resident accumulator (constant index_map):
    #   stats[0] = sum(y), stats[1] = sum(y*y), summed over N and HW.
    @pl.when(jnp.logical_and(pl.program_id(0) == 0, pl.program_id(1) == 0))
    def _():
        stats_ref[...] = jnp.zeros_like(stats_ref)

    x = x_ref[0]                                             # (Cin, hw_tile), native dtype
    w = w_ref[...]                                           # (Cout, Cin),    native dtype
    y = jnp.dot(w, x, preferred_element_type=jnp.float32)    # (Cout, hw_tile) f32 on MXU
    stats_ref[0] += jnp.sum(y, axis=-1, keepdims=True)       # XLU cross-lane reduce
    stats_ref[1] += jnp.sum(y * y, axis=-1, keepdims=True)


def _apply_kernel(x_ref, w_ref, scale_ref, shift_ref, o_ref):
    # x_ref: (1, Cin, hw_tile)  scale/shift: (Cout, 1)  o_ref: (1, Cout, hw_tile)
    x = x_ref[0]
    w = w_ref[...]
    y = jnp.dot(w, x, preferred_element_type=jnp.float32)    # (Cout, hw_tile) f32
    o_ref[0] = (y * scale_ref[...] + shift_ref[...]).astype(o_ref.dtype)


def skip_conv(x_nchw, weight, bias, gamma, beta):
    """Forward of SkipConv: Conv2d(kernel_size=1) + BatchNorm2d (training-mode stats).

    x_nchw: (N, Cin, H, W); weight: (Cout, Cin) or (Cout, Cin, 1, 1);
    bias/gamma/beta: (Cout,).
    The conv bias cancels exactly through BN's mean subtraction, so it is unused.
    """
    del bias  # (xW + b) - mean(xW + b) == xW - mean(xW)
    N, Cin, H, W = x_nchw.shape
    Cout = weight.shape[0]
    weight2d = weight.reshape(Cout, Cin)      # accept PyTorch (Cout, Cin, 1, 1) too
    HW = H * W
    x3 = x_nchw.reshape(N, Cin, HW)           # NCHW -> (N, Cin, HW), no transpose

    hw_tile = _pick_hw_tile(HW, Cin, Cout, jnp.dtype(x_nchw.dtype).itemsize)
    n_tiles = HW // hw_tile
    grid = (N, n_tiles)

    x_spec = pl.BlockSpec((1, Cin, hw_tile), lambda n, t: (n, 0, t))
    w_spec = pl.BlockSpec((Cout, Cin), lambda n, t: (0, 0))         # resident
    vec_spec = pl.BlockSpec((Cout, 1), lambda n, t: (0, 0))         # resident
    stats_spec = pl.BlockSpec((2, Cout, 1), lambda n, t: (0, 0, 0))  # resident accumulator

    # ---- Phase 1: global per-channel sum(y), sum(y*y) (single read of x) ----
    stats = pl.pallas_call(
        _stats_kernel,
        out_shape=jax.ShapeDtypeStruct((2, Cout, 1), jnp.float32),
        grid_spec=pltpu.PrefetchScalarGridSpec(
            num_scalar_prefetch=0,
            grid=grid,
            in_specs=[x_spec, w_spec],
            out_specs=stats_spec,
        ),
        compiler_params=pltpu.CompilerParams(
            dimension_semantics=("arbitrary", "arbitrary"),
            vmem_limit_bytes=_VMEM_LIMIT),
    )(x3, weight2d)
    sum_y, sum_yy = stats[0], stats[1]                       # each (Cout, 1) f32

    # ---- Fold BN into one FMA: out = y * scale + shift (tiny, plain JAX) ----
    m = jnp.float32(N * HW)
    mean = sum_y / m
    var = jnp.maximum(sum_yy / m - mean * mean, 0.0)         # guard f32 cancellation
    scale = gamma.reshape(Cout, 1).astype(jnp.float32) * jax.lax.rsqrt(var + BN_EPS)
    shift = beta.reshape(Cout, 1).astype(jnp.float32) - mean * scale

    # ---- Phase 2: recompute y per tile, apply the affine, write NCHW directly ----
    out3 = pl.pallas_call(
        _apply_kernel,
        out_shape=jax.ShapeDtypeStruct((N, Cout, HW), x_nchw.dtype),
        grid_spec=pltpu.PrefetchScalarGridSpec(
            num_scalar_prefetch=0,
            grid=grid,
            in_specs=[x_spec, w_spec, vec_spec, vec_spec],
            out_specs=pl.BlockSpec((1, Cout, hw_tile), lambda n, t: (n, 0, t)),
        ),
        compiler_params=pltpu.CompilerParams(
            dimension_semantics=("parallel", "parallel"),
            vmem_limit_bytes=_VMEM_LIMIT),
    )(x3, weight2d, scale, shift)

    return out3.reshape(N, Cout, H, W)


def skip_conv_ref(x_nchw, weight, bias, gamma, beta):
    """Pure-JAX reference (Conv2d 1x1 with bias + BatchNorm2d training-mode)."""
    w2 = weight.reshape(weight.shape[0], -1)
    y = jnp.einsum("nchw,oc->nohw", x_nchw, w2) + bias[None, :, None, None]
    mean = jnp.mean(y, axis=(0, 2, 3), keepdims=True)
    var = jnp.mean((y - mean) ** 2, axis=(0, 2, 3), keepdims=True)
    y_hat = (y - mean) * jax.lax.rsqrt(var + BN_EPS)
    return y_hat * gamma[None, :, None, None] + beta[None, :, None, None]


if __name__ == "__main__":
    key = jax.random.PRNGKey(0)
    k_x, k_w, k_b, k_g, k_be = jax.random.split(key, 5)

    N, Cin, Cout, H, W = 2, 4, 8, 16, 16

    x = jax.random.normal(k_x, (N, Cin, H, W), dtype=jnp.float32)
    weight = jax.random.normal(k_w, (Cout, Cin), dtype=jnp.float32) * 0.5  # 1x1 conv kernel
    bias = jax.random.normal(k_b, (Cout,), dtype=jnp.float32) * 0.1
    gamma = 1.0 + 0.1 * jax.random.normal(k_g, (Cout,), dtype=jnp.float32)
    beta = 0.1 * jax.random.normal(k_be, (Cout,), dtype=jnp.float32)

    out = jax.block_until_ready(skip_conv(x, weight, bias, gamma, beta))
    ref = jax.block_until_ready(skip_conv_ref(x, weight, bias, gamma, beta))

    assert out.shape == (N, Cout, H, W)
    assert jnp.allclose(out, ref, atol=1e-4, rtol=1e-4)

    print("KERNEL_OK")
</pallas_src>

<mosaic_0001>
module attributes {stable_mosaic.version = 11 : i64} {
  func.func @_stats_kernel(%arg0: i32, %arg1: i32, %arg2: memref<1x4x256xf32, #tpu.memory_space<vmem>>, %arg3: memref<8x4xf32, #tpu.memory_space<vmem>>, %arg4: memref<2x8x1xf32, #tpu.memory_space<vmem>>) attributes {dimension_semantics = [#tpu.dimension_semantics<arbitrary>, #tpu.dimension_semantics<arbitrary>], iteration_bounds = array<i64: 2, 1>, scalar_prefetch = 0 : i64, scratch_operands = 0 : i64, tpu.core_type = #tpu.core_type<tc>, window_params = [{transform_indices = @transform_0, window_bounds = array<i64: 1, 4, 256>}, {pipeline_mode = #tpu.pipeline_mode<synchronous>, transform_indices = @transform_1, window_bounds = array<i64: 8, 4>}, {pipeline_mode = #tpu.pipeline_mode<synchronous>, transform_indices = @transform_2, window_bounds = array<i64: 2, 8, 1>}]} {
    %c0_i32 = arith.constant 0 : i32
    %0 = arith.cmpi eq, %arg0, %c0_i32 : i32
    %c0_i32_0 = arith.constant 0 : i32
    %1 = arith.cmpi eq, %arg1, %c0_i32_0 : i32
    %2 = arith.andi %0, %1 : i1
    %3 = arith.extui %2 : i1 to i32
    %c0_i32_1 = arith.constant 0 : i32
    %4 = arith.cmpi ne, %3, %c0_i32_1 : i32
    scf.if %4 {
      %cst_19 = arith.constant 0.000000e+00 : f32
      %26 = vector.broadcast %cst_19 : f32 to vector<2x8x1xf32>
      %c0_20 = arith.constant 0 : index
      %c0_21 = arith.constant 0 : index
      %c0_22 = arith.constant 0 : index
      %27 = vector.load %arg4[%c0_20, %c0_21, %c0_22] : memref<2x8x1xf32, #tpu.memory_space<vmem>>, vector<2x8x1xf32>
      tpu.vector_store %arg4[%c0_20, %c0_21, %c0_22], %26 {strides = array<i32>} : memref<2x8x1xf32, #tpu.memory_space<vmem>>, vector<2x8x1xf32>,
    } else {
    }
    %c0 = arith.constant 0 : index
    %c0_2 = arith.constant 0 : index
    %c0_3 = arith.constant 0 : index
    %5 = vector.load %arg2[%c0, %c0_2, %c0_3] : memref<1x4x256xf32, #tpu.memory_space<vmem>>, vector<1x4x256xf32>
    %6 = vector.shape_cast %5 : vector<1x4x256xf32> to vector<4x256xf32>
    %c0_4 = arith.constant 0 : index
    %c0_5 = arith.constant 0 : index
    %7 = vector.load %arg3[%c0_4, %c0_5] : memref<8x4xf32, #tpu.memory_space<vmem>>, vector<8x4xf32>
    %cst = arith.constant dense<0.000000e+00> : vector<8x256xf32>
    %8 = tpu.matmul %7, %6, %cst {dimension_numbers = #tpu.dot_dimension_numbers<[1], [0], [0], [1], [0, 0, 1, 1], [], []>} : vector<8x4xf32>, vector<4x256xf32>, vector<8x256xf32> -> vector<8x256xf32>
    %c0_6 = arith.constant 0 : index
    %c0_7 = arith.constant 0 : index
    %c0_8 = arith.constant 0 : index
    %9 = vector.load %arg4[%c0_6, %c0_7, %c0_8] : memref<2x8x1xf32, #tpu.memory_space<vmem>>, vector<1x8x1xf32>
    %10 = vector.shape_cast %9 : vector<1x8x1xf32> to vector<8x1xf32>
    %cst_9 = arith.constant dense<0.000000e+00> : vector<8xf32>
    %11 = vector.multi_reduction <add>, %8, %cst_9 [1] : vector<8x256xf32> to vector<8xf32>
    %12 = vector.shape_cast %11 : vector<8xf32> to vector<8x1xf32>
    %13 = arith.addf %10, %12 : vector<8x1xf32>
    %c0_10 = arith.constant 0 : index
    %c0_11 = arith.constant 0 : index
    %c0_12 = arith.constant 0 : index
    %14 = vector.load %arg4[%c0_10, %c0_11, %c0_12] : memref<2x8x1xf32, #tpu.memory_space<vmem>>, vector<1x8x1xf32>
    %15 = vector.shape_cast %14 : vector<1x8x1xf32> to vector<8x1xf32>
    %16 = vector.shape_cast %13 : vector<8x1xf32> to vector<1x8x1xf32>
    tpu.vector_store %arg4[%c0_10, %c0_11, %c0_12], %16 {strides = array<i32>} : memref<2x8x1xf32, #tpu.memory_space<vmem>>, vector<1x8x1xf32>,
    %c1 = arith.constant 1 : index
    %c0_13 = arith.constant 0 : index
    %c0_14 = arith.constant 0 : index
    %17 = vector.load %arg4[%c1, %c0_13, %c0_14] : memref<2x8x1xf32, #tpu.memory_space<vmem>>, vector<1x8x1xf32>
    %18 = vector.shape_cast %17 : vector<1x8x1xf32> to vector<8x1xf32>
    %19 = arith.mulf %8, %8 : vector<8x256xf32>
    %cst_15 = arith.constant dense<0.000000e+00> : vector<8xf32>
    %20 = vector.multi_reduction <add>, %19, %cst_15 [1] : vector<8x256xf32> to vector<8xf32>
    %21 = vector.shape_cast %20 : vector<8xf32> to vector<8x1xf32>
    %22 = arith.addf %18, %21 : vector<8x1xf32>
    %c1_16 = arith.constant 1 : index
    %c0_17 = arith.constant 0 : index
    %c0_18 = arith.constant 0 : index
    %23 = vector.load %arg4[%c1_16, %c0_17, %c0_18] : memref<2x8x1xf32, #tpu.memory_space<vmem>>, vector<1x8x1xf32>
    %24 = vector.shape_cast %23 : vector<1x8x1xf32> to vector<8x1xf32>
    %25 = vector.shape_cast %22 : vector<8x1xf32> to vector<1x8x1xf32>
    tpu.vector_store %arg4[%c1_16, %c0_17, %c0_18], %25 {strides = array<i32>} : memref<2x8x1xf32, #tpu.memory_space<vmem>>, vector<1x8x1xf32>,
    return
  }
  func.func @transform_0(%arg0: i32, %arg1: i32) -> (i32, i32, i32) {
    %c0_i32 = arith.constant 0 : i32
    %c0_i32_0 = arith.constant 0 : i32
    return %arg0, %c0_i32, %arg1 : i32, i32, i32
  }
  func.func @transform_1(%arg0: i32, %arg1: i32) -> (i32, i32) {
    %c0_i32 = arith.constant 0 : i32
    %c0_i32_0 = arith.constant 0 : i32
    %c0_i32_1 = arith.constant 0 : i32
    return %c0_i32, %c0_i32_0 : i32, i32
  }
  func.func @transform_2(%arg0: i32, %arg1: i32) -> (i32, i32, i32) {
    %c0_i32 = arith.constant 0 : i32
    %c0_i32_0 = arith.constant 0 : i32
    %c0_i32_1 = arith.constant 0 : i32
    %c0_i32_2 = arith.constant 0 : i32
    return %c0_i32, %c0_i32_0, %c0_i32_1 : i32, i32, i32
  }
}

</mosaic_0001>

<llo_original>
// kernel: tpu_custom_call.1
$region0: #{tpu_custom_call.1}
  #allocation0 [shape = 'u32[]', space=smem, size = 0x4, offset = 0x4, fixed_abs, tag = 'smem constant byte address 0x4 - core index']
  #allocation1 [shape = 'u32[144,128]{1,0:T(1,128)}', space=vmem, size = 0x12000, scoped, tag = 'internal scratch']
  %s0 = inlined_call_operand.hbm [shape: f32[2,4,256], index: 0, kind: input, shape index: {}]
  %s1 = inlined_call_operand.vmem [shape: f32[8,4], index: 1, kind: input, shape index: {}]
  %s2 = inlined_call_operand.vmem [shape: f32[2,8,1], index: 2, kind: output, shape index: {}]
  %s3 = sld [smem:[#allocation0]]
  $region49: #{tpu_custom_call.1} parent=0
    _
  %s5 = ssub.s32 1, %s3
  %s6 = scalar_select 0, %s5, %s3
  $region1: #{tpu_custom_call.1} parent=0
    #allocation2 [shape = 'u8[8192]{0}', space=vmem, size = 0x2000, scoped, tag = 'input window, operand 0']
    #allocation3 [shape = 's32[2]{0}', space=sflag, size = 0x8, scoped, tag = 'scoped memory for tpu_custom_call.1']
    %7 = vsyncpa [#allocation3], 0
    %s8 = scalar_lea.sflag [#allocation3], 1
    %9 = vsyncpa %s8, 0
    loop: start=0, step=1, limit=4
    $region2: #{tpu_custom_call.1} parent=1 // loop_pre_header
      _
    $region3: #{tpu_custom_call.1} parent=1 // loop_header
      %s11 = sphi 0, %s15
      %p12 = scmp.ge.s32.totalorder %s11, 4
      %s18 = sphi 0, %s30
      %s19 = sphi 0, %s26
      %s20 = sphi 0, %s18
      %s21 = sphi 0, %s19
      %s22 = sphi 0, %s20
      %s23 = sphi 0, %s21
      %s35 = sphi 0, %s37
      %s38 = sphi 0, %s35
      %s39 = sphi 0, %s38
      %s55 = sphi 0, %s39
      %s59 = sphi 0, %s59
      %s61 = sphi 0, %s59
      %s62 = sphi 0, %s61
      %s76 = sphi 0, %s62
      %s80 = sphi 0, %s80
      %s82 = sphi 0, %s80
      %s83 = sphi 0, %s82
      %s97 = sphi 0, %s83
    $region4: #{tpu_custom_call.1} parent=1 // loop_header_branch
      %14 = sbr.rel (%p12) target = $region8
    $region5: #{tpu_custom_call.1} parent=1 // loop_body
      %s16 = ssub.s32 %s11, 1
      %s17 = ssub.s32 %s11, 2
      %s24 = sadd.s32 1, %s19
      %p25 = scmp.ge.s32.totalorder %s24, 1
      %s26 = scalar_select %p25, 0, %s24
      %s27 = sadd.s32 1, %s18
      %s28 = scalar_select %p25, %s27, %s18
      %p29 = scmp.ge.s32.totalorder %s28, 2
      %s30 = scalar_select %p29, 0, %s28
      %s31 = ssub.s32 %s18, %s30
      %s32 = ssub.s32 %s19, %s26
      %s33 = sor.u32 %s31, %s32
      %p34 = scmp.eq.s32.totalorder %s33, 0
      %s36 = sadd.s32 %s35, 1
      %s37 = scalar_select %p34, %s35, %s36
      %p40 = pneg %p34
      %p41 = scmp.eq.s32.totalorder %s11, 1
      %p42 = por %p40, %p41
      %p43 = scmp.ne.s32.totalorder %s35, %s38
      %p44 = scmp.eq.s32.totalorder %s11, 0
      %p45 = por %p43, %p44
      %p46 = scmp.ne.s32.totalorder %s35, %s38
      %p47 = scmp.eq.s32.totalorder %s16, 1
      %p48 = por %p46, %p47
      %p49 = scmp.ne.s32.totalorder %s38, %s39
      %p50 = scmp.eq.s32.totalorder %s16, 0
      %p51 = por %p49, %p50
      %p52 = scmp.ne.s32.totalorder %s38, %s39
      %p53 = scmp.eq.s32.totalorder %s17, 1
      %p54 = por %p52, %p53
      %p56 = scmp.ne.s32.totalorder %s39, %s55
      %p57 = scmp.eq.s32.totalorder %s17, 0
      %p58 = por %p56, %p57
      %s60 = sadd.s32 %s59, 1
      %p63 = scmp.eq.s32.totalorder %s11, 1
      %p64 = scmp.ne.s32.totalorder %s59, %s61
      %p65 = scmp.eq.s32.totalorder %s11, 0
      %p66 = por %p64, %p65
      %p67 = scmp.ne.s32.totalorder %s59, %s61
      %p68 = scmp.eq.s32.totalorder %s16, 1
      %p69 = por %p67, %p68
      %p70 = scmp.ne.s32.totalorder %s61, %s62
      %p71 = scmp.eq.s32.totalorder %s16, 0
      %p72 = por %p70, %p71
      %p73 = scmp.ne.s32.totalorder %s61, %s62
      %p74 = scmp.eq.s32.totalorder %s17, 1
      %p75 = por %p73, %p74
      %p77 = scmp.ne.s32.totalorder %s62, %s76
      %p78 = scmp.eq.s32.totalorder %s17, 0
      %p79 = por %p77, %p78
      %s81 = sadd.s32 %s80, 1
      %p84 = scmp.eq.s32.totalorder %s11, 1
      %p85 = scmp.ne.s32.totalorder %s80, %s82
      %p86 = scmp.eq.s32.totalorder %s11, 0
      %p87 = por %p85, %p86
      %p88 = scmp.ne.s32.totalorder %s80, %s82
      %p89 = scmp.eq.s32.totalorder %s16, 1
      %p90 = por %p88, %p89
      %p91 = scmp.ne.s32.totalorder %s82, %s83
      %p92 = scmp.eq.s32.totalorder %s16, 0
      %p93 = por %p91, %p92
      %p94 = scmp.ne.s32.totalorder %s82, %s83
      %p95 = scmp.eq.s32.totalorder %s17, 1
      %p96 = por %p94, %p95
      %p98 = scmp.ne.s32.totalorder %s83, %s97
      %p99 = scmp.eq.s32.totalorder %s17, 0
      %p100 = por %p98, %p99
      %p101 = scmp.le.s32.totalorder 1, %s11
      %p102 = scmp.lt.s32.totalorder %s11, 3
      %p103 = pnand %p101, %p102
      %p104 = pneg %p103
      // Predicated region
      $region9: #{tpu_custom_call.1} parent=5 // pred_check
        _
      $region10: #{tpu_custom_call.1} parent=5 // pred_check_branch
        %106 = sbr.rel (%p103) target = $region12
      $region11: #{tpu_custom_call.1} parent=5 // pred_region
        %s107 = ssub.s32 %s11, 1
        // Predicated region
        $region13: #{tpu_custom_call.1} parent=11 // pred_check
          %p108 = pneg %p72
        $region14: #{tpu_custom_call.1} parent=11 // pred_check_branch
          %110 = sbr.rel (%p108) target = $region16
        $region15: #{tpu_custom_call.1} parent=11 // pred_region
          _
        $region16: #{tpu_custom_call.1} parent=11 // pred_fallthru
          _
      $region12: #{tpu_custom_call.1} parent=5 // pred_fallthru
        _
      %p111 = scmp.lt.s32.totalorder %s11, 2
      // Predicated region
      $region17: #{tpu_custom_call.1} parent=5 // pred_check
        %p112 = pneg %p111
      $region18: #{tpu_custom_call.1} parent=5 // pred_check_branch
        %114 = sbr.rel (%p112) target = $region20
      $region19: #{tpu_custom_call.1} parent=5 // pred_region
        // Predicated region
        $region21: #{tpu_custom_call.1} parent=19 // pred_check
          %p115 = pneg %p45
        $region22: #{tpu_custom_call.1} parent=19 // pred_check_branch
          %117 = sbr.rel (%p115) target = $region24
        $region23: #{tpu_custom_call.1} parent=19 // pred_region
          %s118 = sand.u32 %s35, 1
          %s119 = scalar_lea.sflag [#allocation3], %s118
          %s120 = sand.u32 %s35, 1
          %s121 = smul.addr %s120, 8
          %s122 = scalar_lea.vmem [#allocation2], %s121
          %s123 = smul.u32 2, %s19
          %s125 = ssub.s32 128, 128
          %126 = vsyncadd %s119, %s125
          %s127 = smul.addr %s18, 2
          %s128 = sadd.s32 %s123, %s127
          %s129 = smul.addr %s128, 64
          %s130 = scalar_lea.hbm %s0, %s129
          %s132 = sshll.u32 %s122, 4
          %s133 = int_to_ptr.vmem [resolvable:$true] %s132
          %135 = dma.hbm_to_vmem [thread:$0]  %s130, 128, %s133, %s119
        $region24: #{tpu_custom_call.1} parent=19 // pred_fallthru
          _
      $region20: #{tpu_custom_call.1} parent=5 // pred_fallthru
        _
      %p136 = scmp.le.s32.totalorder 1, %s11
      %p137 = scmp.lt.s32.totalorder %s11, 3
      %p138 = pnand %p136, %p137
      %p139 = pneg %p138
      // Predicated region
      $region25: #{tpu_custom_call.1} parent=5 // pred_check
        _
      $region26: #{tpu_custom_call.1} parent=5 // pred_check_branch
        %141 = sbr.rel (%p138) target = $region28
      $region27: #{tpu_custom_call.1} parent=5 // pred_region
        %s142 = ssub.s32 %s11, 1
        %s143 = sand.u32 %s38, 1
        %s144 = scalar_lea.sflag [#allocation3], %s143
        %s145 = sand.u32 %s38, 1
        %s146 = smul.addr %s145, 8
        %s147 = scalar_lea.vmem [#allocation2], %s146
        // Predicated region
        $region29: #{tpu_custom_call.1} parent=27 // pred_check
          %p148 = pneg %p51
        $region30: #{tpu_custom_call.1} parent=27 // pred_check_branch
          %150 = sbr.rel (%p148) target = $region32
        $region31: #{tpu_custom_call.1} parent=27 // pred_region
          %151 = dma.done %s144, 128
        $region32: #{tpu_custom_call.1} parent=27 // pred_fallthru
          _
        %s152 = sand.u32 %s38, 1
        %s153 = scalar_lea.sflag [#allocation3], %s152
        %s154 = sand.u32 %s38, 1
        %s155 = smul.addr %s154, 8
        %s156 = scalar_lea.vmem [#allocation2], %s155
        %p157 = pneg %p51
        %p158 = pneg %p48
        %p159 = pneg %p72
        %p160 = pneg %p69
        %p161 = pneg %p93
        %p162 = pneg %p90
        %s163 = smul.u32 2, %s21
        %p164 = scmp.eq.s32.totalorder %s20, 0
        %p165 = scmp.eq.s32.totalorder %s21, 0
        %p166 = pnand %p164, %p165
        %p167 = pneg %p166
        // Predicated region
        $region33: #{tpu_custom_call.1} parent=27 // pred_check
          _
        $region34: #{tpu_custom_call.1} parent=27 // pred_check_branch
          %169 = sbr.rel (%p166) target = $region36
        $region35: #{tpu_custom_call.1} parent=27 // pred_region
          %vm170 = vcmask 7168
          %171 = vst.msk [vmem:[%s2] sm:$0xff] %vm170, 0.0
          %172 = vst.msk [vmem:[%s2 + $0x8] sm:$0xff] %vm170, 0.0
        $region36: #{tpu_custom_call.1} parent=27 // pred_fallthru
          _
        %v173 = vld [vmem:[%s147] sm:$0xff]
        %v174 = vld [vmem:[%s1] sm:$0xff]
        %v176 = vcombine.high %v173, %v173
        %vm177 = vcmask 31744
        %v179 = vsel %vm177, %v174, 0
        %vm181 = vcmask 1043456
        %v182 = vsel %vm181, %v173, 0
        %v184 = vsel %vm181, %v176, 0
        %186 = vmatprep.subr.mxu0 %v184
        %187 = vmatpush1.msra.mxu0 %v182
        %188 = vmatprep.subr.mxu0 0.0
        %189 = vmatpush1.msra.mxu0 0.0
        %190 = vmatprep.subr.mxu0 0.0
        %191 = vmatpush1.msra.mxu0 0.0
        %192 = vmatprep.subr.mxu0 0.0
        %193 = vmatpush1.msra.mxu0 0.0
        %194 = vmatprep.subr.mxu0 0.0
        %195 = vmatpush1.msra.mxu0 0.0
        %196 = vmatprep.subr.mxu0 0.0
        %197 = vmatpush1.msra.mxu0 0.0
        %198 = vmatprep.subr.mxu0 0.0
        %199 = vmatpush1.msra.mxu0 0.0
        %200 = vmatprep.subr.mxu0 0.0
        %201 = vmatpush1.msra.mxu0 0.0
        %202 = vmatprep.subr.mxu0 0.0
        %203 = vmatpush1.msra.mxu0 0.0
        %204 = vmatprep.subr.mxu0 0.0
        %205 = vmatpush1.msra.mxu0 0.0
        %206 = vmatprep.subr.mxu0 0.0
        %207 = vmatpush1.msra.mxu0 0.0
        %208 = vmatprep.subr.mxu0 0.0
        %209 = vmatpush1.msra.mxu0 0.0
        %210 = vmatprep.subr.mxu0 0.0
        %211 = vmatpush1.msra.mxu0 0.0
        %212 = vmatprep.subr.mxu0 0.0
        %213 = vmatpush1.msra.mxu0 0.0
        %214 = vmatprep.subr.mxu0 0.0
        %215 = vmatpush1.msra.mxu0 0.0
        %216 = vmatprep.subr.mxu0 0.0
        %217 = vmatpush1.msra.mxu0 0.0
        %218 = vmatprep.subr.mxu0 0.0
        %219 = vmatpush1.msra.mxu0 0.0
        %220 = vmatprep.subr.mxu0 0.0
        %221 = vmatpush1.msra.mxu0 0.0
        %222 = vmatprep.subr.mxu0 0.0
        %223 = vmatpush1.msra.mxu0 0.0
        %224 = vmatprep.subr.mxu0 0.0
        %225 = vmatpush1.msra.mxu0 0.0
        %226 = vmatprep.subr.mxu0 0.0
        %227 = vmatpush1.msra.mxu0 0.0
        %228 = vmatprep.subr.mxu0 0.0
        %229 = vmatpush1.msra.mxu0 0.0
        %230 = vmatprep.subr.mxu0 0.0
        %231 = vmatpush1.msra.mxu0 0.0
        %232 = vmatprep.subr.mxu0 0.0
        %233 = vmatpush1.msra.mxu0 0.0
        %234 = vmatprep.subr.mxu0 0.0
        %235 = vmatpush1.msra.mxu0 0.0
        %236 = vmatprep.subr.mxu0 0.0
        %237 = vmatpush1.msra.mxu0 0.0
        %238 = vmatprep.subr.mxu0 0.0
        %239 = vmatpush1.msra.mxu0 0.0
        %240 = vmatprep.subr.mxu0 0.0
        %241 = vmatpush1.msra.mxu0 0.0
        %242 = vmatprep.subr.mxu0 0.0
        %243 = vmatpush1.msra.mxu0 0.0
        %244 = vmatprep.subr.mxu0 0.0
        %245 = vmatpush1.msra.mxu0 0.0
        %246 = vmatprep.subr.mxu0 0.0
        %247 = vmatpush1.msra.mxu0 0.0
        %248 = vmatprep.subr.mxu0 0.0
        %249 = vmatpush1.msra.mxu0 0.0
        %250 = vmatprep.mubr.f32.mxu0 0.0
        %251 = vmatmul.mubr.f32.gmra.mrb[0].mxu0 %v179
        %v252 = vpop.f32.mrb[0].mxu0
        %v253 = vadd.f32 0.0, %v252
        %v254 = vpop.f32.mrb[0].mxu0
        %v255 = vadd.f32 0.0, %v254
        %256 = vdwg.mxu0
        %v257 = vld [vmem:[%s2] sm:$0xff]
        %v258 = vadd.f32 %v253, %v255
        %259 = vadd.xlane.f32.xlu0 %v258
        %v260 = vpop.xlane.xlu0 %259
        %v261 = vadd.f32 %v257, %v260
        %vm262 = vcmask 7168
        %263 = vst.msk [vmem:[%s2] sm:$0xff] %vm262, %v261
        %s264 = scalar_lea.vmem %s2, 8
        %v265 = vld [vmem:[%s264] sm:$0xff]
        %v266 = vmul.f32 %v253, %v253
        %v267 = vmul.f32 %v255, %v255
        %v268 = vadd.f32 %v266, %v267
        %269 = vadd.xlane.f32.xlu0 %v268
        %v270 = vpop.xlane.xlu0 %269
        %v271 = vadd.f32 %v265, %v270
        %272 = vst.msk [vmem:[%s264] sm:$0xff] %vm262, %v271
        // Predicated region
        $region37: #{tpu_custom_call.1} parent=27 // pred_check
          %p273 = pneg %p90
        $region38: #{tpu_custom_call.1} parent=27 // pred_check_branch
          %275 = sbr.rel (%p273) target = $region40
        $region39: #{tpu_custom_call.1} parent=27 // pred_region
          _
        $region40: #{tpu_custom_call.1} parent=27 // pred_fallthru
          _
        // Predicated region
        $region41: #{tpu_custom_call.1} parent=27 // pred_check
          %p276 = pneg %p90
        $region42: #{tpu_custom_call.1} parent=27 // pred_check_branch
          %278 = sbr.rel (%p276) target = $region44
        $region43: #{tpu_custom_call.1} parent=27 // pred_region
          _
        $region44: #{tpu_custom_call.1} parent=27 // pred_fallthru
          _
      $region28: #{tpu_custom_call.1} parent=5 // pred_fallthru
        _
      %p279 = scmp.le.s32.totalorder 2, %s11
      // Predicated region
      $region45: #{tpu_custom_call.1} parent=5 // pred_check
        %p280 = pneg %p279
      $region46: #{tpu_custom_call.1} parent=5 // pred_check_branch
        %282 = sbr.rel (%p280) target = $region48
      $region47: #{tpu_custom_call.1} parent=5 // pred_region
        %s283 = ssub.s32 %s11, 2
      $region48: #{tpu_custom_call.1} parent=5 // pred_fallthru
        _
    $region6: #{tpu_custom_call.1} parent=1 // loop_footer
      %s15 = sadd.s32 1, %s11
    $region7: #{tpu_custom_call.1} parent=1 // loop_footer_branch
      %10 = sbr.rel target = $region3
    $region8: #{tpu_custom_call.1} parent=1 // loop_exit
      _
    %284 = vsyncpa [#allocation3], 1
    %s285 = scalar_lea.sflag [#allocation3], 1
    %286 = vsyncpa %s285, 1

</llo_original>
